<compile_context>
chip_gen: v7x
topology: tpu7x:2x2x1
jax: 0.10.0
libtpu: 0.0.40
codegen_flags: <defaults>
</compile_context>

<pallas_src>
import math

import jax
import jax.numpy as jnp
from jax.experimental import pallas as pl
from jax.experimental.pallas import tpu as pltpu


def _gumbel_select_kernel(x_ref, u_ref, o_ref):
    # x_ref, u_ref, o_ref: (K, TN) tiles; selection axis K on sublanes.
    x = x_ref[...].astype(jnp.float32)
    u = u_ref[...].astype(jnp.float32)

    eps = jnp.float32(1e-20)
    g = -jnp.log(-jnp.log(u + eps) + eps)          # Gumbel(0, 1)
    z = x + g                                       # argmax(z) == argmax(softmax(z/T))

    k = z.shape[0]
    row = jax.lax.broadcasted_iota(jnp.int32, z.shape, dimension=0)

    # First-occurrence argmax along the K (sublane) axis -> one-hot.
    m = jnp.max(z, axis=0, keepdims=True)
    is_max = z >= m
    first_idx = jnp.min(jnp.where(is_max, row, jnp.int32(k)),
                        axis=0, keepdims=True)
    hard = row == first_idx

    o_ref[...] = jnp.where(hard, jnp.float32(1.0), jnp.float32(0.0)).astype(o_ref.dtype)


def _pick_lane_tile(n, k, max_tile_bytes=4 << 20):
    """Largest lane tile: multiple of 128 dividing N, bounded by a VMEM budget."""
    cap = max(128, max_tile_bytes // (4 * max(k, 1)))
    if n <= cap:
        return n                      # single tile; full-dim block is always legal
    start = cap - (cap % 128)
    for d in range(start, 127, -128):
        if n % d == 0:
            return d
    return n                          # fallback: one full-width tile


def gumbel_softmax_selector(logits, key, *, dim=0, temperature=1.0):
    """Pallas forward of GumbelSoftmaxSelector: hard one-hot along `dim`.

    `temperature` (> 0) does not change the argmax and is therefore not applied
    numerically in the kernel.
    """
    del temperature  # positive scaling is argmax-invariant for the hard output
    orig_shape = logits.shape
    K = orig_shape[dim]

    if dim == 0:
        moved_shape = orig_shape
        x2 = logits.reshape(K, -1)                  # free reshape, no transpose
    else:
        xm = jnp.moveaxis(logits, dim, 0)
        moved_shape = xm.shape
        x2 = xm.reshape(K, -1)
    N = x2.shape[1]

    # Gumbel uniform noise, same distribution as torch.rand_like.
    u = jax.random.uniform(key, (K, N), dtype=jnp.float32)

    tn = _pick_lane_tile(N, K)
    grid = (N // tn,)

    spec = pl.BlockSpec((K, tn), lambda i: (0, i))
    out2 = pl.pallas_call(
        _gumbel_select_kernel,
        out_shape=jax.ShapeDtypeStruct((K, N), logits.dtype),
        grid=grid,
        in_specs=[spec, spec],
        out_specs=spec,
        compiler_params=pltpu.CompilerParams(
            dimension_semantics=("parallel",),      # rows independent; shards on v7x
        ),
    )(x2, u)

    out = out2.reshape(moved_shape)
    if dim != 0:
        out = jnp.moveaxis(out, 0, dim)
    return out


if __name__ == "__main__":
    key = jax.random.PRNGKey(0)
    k_logits, k_noise = jax.random.split(key)

    # dim=0 is the selection axis (K=8 options); remaining axes are batch/spatial.
    logits = jax.random.normal(k_logits, (8, 2, 16, 16), dtype=jnp.float32)

    out = gumbel_softmax_selector(logits, k_noise, dim=0, temperature=1.0)
    out = jax.block_until_ready(out)

    # Sanity: output is a hard one-hot along dim 0 at every position.
    assert out.shape == logits.shape and out.dtype == logits.dtype
    sums = jnp.sum(out, axis=0)
    assert bool(jnp.all(sums == 1.0))
    assert bool(jnp.all((out == 0.0) | (out == 1.0)))

    print("KERNEL_OK")
</pallas_src>

<mosaic_0001>
module attributes {stable_mosaic.version = 11 : i64} {
  func.func @_gumbel_select_kernel(%arg0: i32, %arg1: memref<8x512xf32, #tpu.memory_space<vmem>>, %arg2: memref<8x512xf32, #tpu.memory_space<vmem>>, %arg3: memref<8x512xf32, #tpu.memory_space<vmem>>) attributes {dimension_semantics = [#tpu.dimension_semantics<parallel>], iteration_bounds = array<i64: 1>, scalar_prefetch = 0 : i64, scratch_operands = 0 : i64, tpu.core_type = #tpu.core_type<tc>, window_params = [{transform_indices = @transform_0, window_bounds = array<i64: 8, 512>}, {transform_indices = @transform_1, window_bounds = array<i64: 8, 512>}, {transform_indices = @transform_2, window_bounds = array<i64: 8, 512>}]} {
    %c0 = arith.constant 0 : index
    %c0_0 = arith.constant 0 : index
    %0 = vector.load %arg1[%c0, %c0_0] : memref<8x512xf32, #tpu.memory_space<vmem>>, vector<8x512xf32>
    %c0_1 = arith.constant 0 : index
    %c0_2 = arith.constant 0 : index
    %1 = vector.load %arg2[%c0_1, %c0_2] : memref<8x512xf32, #tpu.memory_space<vmem>>, vector<8x512xf32>
    %cst = arith.constant 9.99999968E-21 : f32
    %2 = vector.broadcast %cst : f32 to vector<8x512xf32>
    %3 = arith.addf %1, %2 : vector<8x512xf32>
    %4 = math.log %3 : vector<8x512xf32>
    %cst_3 = arith.constant 0.000000e+00 : f32
    %5 = vector.broadcast %cst_3 : f32 to vector<8x512xf32>
    %6 = arith.subf %5, %4 : vector<8x512xf32>
    %cst_4 = arith.constant 9.99999968E-21 : f32
    %7 = vector.broadcast %cst_4 : f32 to vector<8x512xf32>
    %8 = arith.addf %6, %7 : vector<8x512xf32>
    %9 = math.log %8 : vector<8x512xf32>
    %cst_5 = arith.constant 0.000000e+00 : f32
    %10 = vector.broadcast %cst_5 : f32 to vector<8x512xf32>
    %11 = arith.subf %10, %9 : vector<8x512xf32>
    %12 = arith.addf %0, %11 : vector<8x512xf32>
    %13 = tpu.iota {dimensions = array<i32: 0>} : vector<8x512xi32>
    %cst_6 = arith.constant dense<0xFF800000> : vector<512xf32>
    %14 = vector.multi_reduction <maximumf>, %12, %cst_6 [0] : vector<8x512xf32> to vector<512xf32>
    %15 = vector.shape_cast %14 : vector<512xf32> to vector<1x512xf32>
    %16 = vector.broadcast %15 : vector<1x512xf32> to vector<8x512xf32>
    %17 = arith.cmpf oge, %12, %16 : vector<8x512xf32>
    %c8_i32 = arith.constant 8 : i32
    %18 = vector.broadcast %c8_i32 : i32 to vector<8x512xi32>
    %19 = arith.select %17, %13, %18 : vector<8x512xi1>, vector<8x512xi32>
    %cst_7 = arith.constant dense<2147483647> : vector<512xi32>
    %20 = vector.multi_reduction <minsi>, %19, %cst_7 [0] : vector<8x512xi32> to vector<512xi32>
    %21 = vector.shape_cast %20 : vector<512xi32> to vector<1x512xi32>
    %22 = vector.broadcast %21 : vector<1x512xi32> to vector<8x512xi32>
    %23 = arith.cmpi eq, %13, %22 : vector<8x512xi32>
    %cst_8 = arith.constant 1.000000e+00 : f32
    %cst_9 = arith.constant 0.000000e+00 : f32
    %24 = vector.broadcast %cst_8 : f32 to vector<8x512xf32>
    %25 = vector.broadcast %cst_9 : f32 to vector<8x512xf32>
    %26 = arith.select %23, %24, %25 : vector<8x512xi1>, vector<8x512xf32>
    %c0_10 = arith.constant 0 : index
    %c0_11 = arith.constant 0 : index
    %27 = vector.load %arg3[%c0_10, %c0_11] : memref<8x512xf32, #tpu.memory_space<vmem>>, vector<8x512xf32>
    tpu.vector_store %arg3[%c0_10, %c0_11], %26 {strides = array<i32>} : memref<8x512xf32, #tpu.memory_space<vmem>>, vector<8x512xf32>,
    return
  }
  func.func @transform_0(%arg0: i32) -> (i32, i32) {
    %c0_i32 = arith.constant 0 : i32
    %c0_i32_0 = arith.constant 0 : i32
    return %c0_i32, %arg0 : i32, i32
  }
  func.func @transform_1(%arg0: i32) -> (i32, i32) {
    %c0_i32 = arith.constant 0 : i32
    %c0_i32_0 = arith.constant 0 : i32
    return %c0_i32, %arg0 : i32, i32
  }
  func.func @transform_2(%arg0: i32) -> (i32, i32) {
    %c0_i32 = arith.constant 0 : i32
    %c0_i32_0 = arith.constant 0 : i32
    return %c0_i32, %arg0 : i32, i32
  }
}

</mosaic_0001>

<llo_original>
// kernel: tpu_custom_call.1
$region0: #{tpu_custom_call.1}
  #allocation0 [shape = 'u32[]', space=smem, size = 0x4, offset = 0x4, fixed_abs, tag = 'smem constant byte address 0x4 - core index']
  #allocation1 [shape = 'u32[144,128]{1,0:T(1,128)}', space=vmem, size = 0x12000, scoped, tag = 'internal scratch']
  %s0 = inlined_call_operand.hbm [shape: f32[8,512], index: 0, kind: input, shape index: {}]
  %s1 = inlined_call_operand.hbm [shape: f32[8,512], index: 1, kind: input, shape index: {}]
  %s2 = inlined_call_operand.hbm [shape: f32[8,512], index: 2, kind: output, shape index: {}]
  %s3 = sld [smem:[#allocation0]]
  $region26: #{tpu_custom_call.1} parent=0
    _
  %s5 = ssub.s32 1, %s3
  %s6 = scalar_select 0, %s5, %s3
  $region1: #{tpu_custom_call.1} parent=0
    #allocation2 [shape = 'u8[16384]{0}', space=vmem, size = 0x4000, scoped, tag = 'input window, operand 0, single buffered']
    #allocation3 [shape = 's32[1]{0}', space=sflag, size = 0x4, scoped, tag = 'scoped memory for tpu_custom_call.1']
    #allocation4 [shape = 's32[1]{0}', space=sflag, size = 0x4, scoped, tag = 'scoped memory for tpu_custom_call.1']
    #allocation5 [shape = 'u8[16384]{0}', space=vmem, size = 0x4000, scoped, tag = 'input window, operand 1, single buffered']
    #allocation6 [shape = 's32[1]{0}', space=sflag, size = 0x4, scoped, tag = 'scoped memory for tpu_custom_call.1']
    #allocation7 [shape = 'u8[16384]{0}', space=vmem, size = 0x4000, scoped, tag = 'output window, operand 0, single buffered']
    %7 = vsyncpa [#allocation3], 0
    %8 = vsyncpa [#allocation6], 0
    %9 = vsyncpa [#allocation4], 0
    // Predicated region
    $region2: #{tpu_custom_call.1} parent=1 // pred_check
      _
    $region3: #{tpu_custom_call.1} parent=1 // pred_check_branch
      %11 = sbr.rel (0) target = $region5
    $region4: #{tpu_custom_call.1} parent=1 // pred_region
      %s13 = ssub.s32 512, 512
      %14 = vsyncadd [#allocation3], %s13
      %s16 = sshll.u32 [#allocation2], 4
      %s17 = int_to_ptr.vmem [resolvable:$true] %s16
      %19 = dma.hbm_to_vmem [thread:$0]  %s0, 512, %s17, [#allocation3]
    $region5: #{tpu_custom_call.1} parent=1 // pred_fallthru
      _
    // Predicated region
    $region6: #{tpu_custom_call.1} parent=1 // pred_check
      _
    $region7: #{tpu_custom_call.1} parent=1 // pred_check_branch
      %21 = sbr.rel (0) target = $region9
    $region8: #{tpu_custom_call.1} parent=1 // pred_region
      %s23 = ssub.s32 512, 512
      %24 = vsyncadd [#allocation6], %s23
      %s26 = sshll.u32 [#allocation5], 4
      %s27 = int_to_ptr.vmem [resolvable:$true] %s26
      %29 = dma.hbm_to_vmem [thread:$0]  %s1, 512, %s27, [#allocation6]
    $region9: #{tpu_custom_call.1} parent=1 // pred_fallthru
      _
    // Predicated region
    $region10: #{tpu_custom_call.1} parent=1 // pred_check
      _
    $region11: #{tpu_custom_call.1} parent=1 // pred_check_branch
      %31 = sbr.rel (0) target = $region13
    $region12: #{tpu_custom_call.1} parent=1 // pred_region
      %32 = dma.done [#allocation3], 512
    $region13: #{tpu_custom_call.1} parent=1 // pred_fallthru
      _
    // Predicated region
    $region14: #{tpu_custom_call.1} parent=1 // pred_check
      _
    $region15: #{tpu_custom_call.1} parent=1 // pred_check_branch
      %34 = sbr.rel (0) target = $region17
    $region16: #{tpu_custom_call.1} parent=1 // pred_region
      %35 = dma.done [#allocation6], 512
    $region17: #{tpu_custom_call.1} parent=1 // pred_fallthru
      _
    %v36 = vld [vmem:[#allocation2] sm:$0xff]
    %v37 = vld [vmem:[#allocation2 + $0x8] sm:$0xff]
    %v38 = vld [vmem:[#allocation2 + $0x10] sm:$0xff]
    %v39 = vld [vmem:[#allocation2 + $0x18] sm:$0xff]
    %v40 = vld [vmem:[#allocation5] sm:$0xff]
    %v41 = vld [vmem:[#allocation5 + $0x8] sm:$0xff]
    %v42 = vld [vmem:[#allocation5 + $0x10] sm:$0xff]
    %v43 = vld [vmem:[#allocation5 + $0x18] sm:$0xff]
    %v44 = vadd.f32 %v40, 1e-20
    %v45 = vadd.f32 %v41, 1e-20
    %v46 = vadd.f32 %v42, 1e-20
    %v47 = vadd.f32 %v43, 1e-20
    %v48 = vlog2.pop %v44
    %v49 = vmul.f32 %v48, 0.6931472
    %v50 = vlog2.pop %v45
    %v51 = vmul.f32 %v50, 0.6931472
    %v52 = vlog2.pop %v46
    %v53 = vmul.f32 %v52, 0.6931472
    %v54 = vlog2.pop %v47
    %v55 = vmul.f32 %v54, 0.6931472
    %v56 = vsub.f32 0.0, %v49
    %v57 = vsub.f32 0.0, %v51
    %v58 = vsub.f32 0.0, %v53
    %v59 = vsub.f32 0.0, %v55
    %v60 = vadd.f32 %v56, 1e-20
    %v61 = vadd.f32 %v57, 1e-20
    %v62 = vadd.f32 %v58, 1e-20
    %v63 = vadd.f32 %v59, 1e-20
    %v64 = vlog2.pop %v60
    %v65 = vmul.f32 %v64, 0.6931472
    %v66 = vlog2.pop %v61
    %v67 = vmul.f32 %v66, 0.6931472
    %v68 = vlog2.pop %v62
    %v69 = vmul.f32 %v68, 0.6931472
    %v70 = vlog2.pop %v63
    %v71 = vmul.f32 %v70, 0.6931472
    %v72 = vsub.f32 0.0, %v65
    %v73 = vsub.f32 0.0, %v67
    %v74 = vsub.f32 0.0, %v69
    %v75 = vsub.f32 0.0, %v71
    %v76 = vadd.f32 %v36, %v72
    %v77 = vadd.f32 %v37, %v73
    %v78 = vadd.f32 %v38, %v74
    %v79 = vadd.f32 %v39, %v75
    %v80 = vlaneseq
    %v81 = vshrl.u32 %v80, 7
    %v82 = vrot.slane %v76, 4
    %v83 = vmax.f32 %v76, %v82
    %v84 = vrot.slane %v83, 2
    %v85 = vmax.f32 %v83, %v84
    %v86 = vrot.slane %v85, 1
    %v87 = vmax.f32 %v85, %v86
    %v88 = vrot.slane %v77, 4
    %v89 = vmax.f32 %v77, %v88
    %v90 = vrot.slane %v89, 2
    %v91 = vmax.f32 %v89, %v90
    %v92 = vrot.slane %v91, 1
    %v93 = vmax.f32 %v91, %v92
    %v94 = vrot.slane %v78, 4
    %v95 = vmax.f32 %v78, %v94
    %v96 = vrot.slane %v95, 2
    %v97 = vmax.f32 %v95, %v96
    %v98 = vrot.slane %v97, 1
    %v99 = vmax.f32 %v97, %v98
    %v100 = vrot.slane %v79, 4
    %v101 = vmax.f32 %v79, %v100
    %v102 = vrot.slane %v101, 2
    %v103 = vmax.f32 %v101, %v102
    %v104 = vrot.slane %v103, 1
    %v105 = vmax.f32 %v103, %v104
    %vm106 = vcmp.ge.f32.partialorder %v76, %v87
    %vm107 = vcmp.ge.f32.partialorder %v77, %v93
    %vm108 = vcmp.ge.f32.partialorder %v78, %v99
    %vm109 = vcmp.ge.f32.partialorder %v79, %v105
    %v110 = vsel %vm106, %v81, 8
    %v111 = vsel %vm107, %v81, 8
    %v112 = vsel %vm108, %v81, 8
    %v113 = vsel %vm109, %v81, 8
    %v114 = vrot.slane %v110, 4
    %vm115 = vcmp.lt.s32.totalorder %v110, %v114
    %v116 = vsel %vm115, %v110, %v114
    %v117 = vrot.slane %v116, 2
    %vm118 = vcmp.lt.s32.totalorder %v116, %v117
    %v119 = vsel %vm118, %v116, %v117
    %v120 = vrot.slane %v119, 1
    %vm121 = vcmp.lt.s32.totalorder %v119, %v120
    %v122 = vsel %vm121, %v119, %v120
    %v123 = vrot.slane %v111, 4
    %vm124 = vcmp.lt.s32.totalorder %v111, %v123
    %v125 = vsel %vm124, %v111, %v123
    %v126 = vrot.slane %v125, 2
    %vm127 = vcmp.lt.s32.totalorder %v125, %v126
    %v128 = vsel %vm127, %v125, %v126
    %v129 = vrot.slane %v128, 1
    %vm130 = vcmp.lt.s32.totalorder %v128, %v129
    %v131 = vsel %vm130, %v128, %v129
    %v132 = vrot.slane %v112, 4
    %vm133 = vcmp.lt.s32.totalorder %v112, %v132
    %v134 = vsel %vm133, %v112, %v132
    %v135 = vrot.slane %v134, 2
    %vm136 = vcmp.lt.s32.totalorder %v134, %v135
    %v137 = vsel %vm136, %v134, %v135
    %v138 = vrot.slane %v137, 1
    %vm139 = vcmp.lt.s32.totalorder %v137, %v138
    %v140 = vsel %vm139, %v137, %v138
    %v141 = vrot.slane %v113, 4
    %vm142 = vcmp.lt.s32.totalorder %v113, %v141
    %v143 = vsel %vm142, %v113, %v141
    %v144 = vrot.slane %v143, 2
    %vm145 = vcmp.lt.s32.totalorder %v143, %v144
    %v146 = vsel %vm145, %v143, %v144
    %v147 = vrot.slane %v146, 1
    %vm148 = vcmp.lt.s32.totalorder %v146, %v147
    %v149 = vsel %vm148, %v146, %v147
    %vm150 = vcmp.eq.s32.totalorder %v81, %v122
    %vm151 = vcmp.eq.s32.totalorder %v81, %v131
    %vm152 = vcmp.eq.s32.totalorder %v81, %v140
    %vm153 = vcmp.eq.s32.totalorder %v81, %v149
    %v154 = vsel %vm150, 1.0, 0.0
    %v155 = vsel %vm151, 1.0, 0.0
    %v156 = vsel %vm152, 1.0, 0.0
    %v157 = vsel %vm153, 1.0, 0.0
    %158 = vst [vmem:[#allocation7] sm:$0xff] %v154
    %159 = vst [vmem:[#allocation7 + $0x8] sm:$0xff] %v155
    %160 = vst [vmem:[#allocation7 + $0x10] sm:$0xff] %v156
    %161 = vst [vmem:[#allocation7 + $0x18] sm:$0xff] %v157
    // Predicated region
    $region18: #{tpu_custom_call.1} parent=1 // pred_check
      _
    $region19: #{tpu_custom_call.1} parent=1 // pred_check_branch
      %163 = sbr.rel (0) target = $region21
    $region20: #{tpu_custom_call.1} parent=1 // pred_region
      %s165 = ssub.s32 512, 512
      %166 = vsyncadd [#allocation4], %s165
      %s168 = sshll.u32 [#allocation7], 4
      %s169 = int_to_ptr.vmem [resolvable:$true] %s168
      %171 = dma.vmem_to_hbm [thread:$0]  %s169, 512, %s2, [#allocation4]
    $region21: #{tpu_custom_call.1} parent=1 // pred_fallthru
      _
    // Predicated region
    $region22: #{tpu_custom_call.1} parent=1 // pred_check
      _
    $region23: #{tpu_custom_call.1} parent=1 // pred_check_branch
      %173 = sbr.rel (0) target = $region25
    $region24: #{tpu_custom_call.1} parent=1 // pred_region
      %174 = dma.done [#allocation4], 512
    $region25: #{tpu_custom_call.1} parent=1 // pred_fallthru
      _
    %175 = vsyncpa [#allocation3], 1
    %176 = vsyncpa [#allocation6], 1
    %177 = vsyncpa [#allocation4], 1

</llo_original>
